<compile_context>
chip_gen: v7x
topology: tpu7x:2x2x1
jax: 0.10.0
libtpu: 0.0.40
codegen_flags: <defaults>
</compile_context>

<pallas_src>
import functools

import jax
import jax.numpy as jnp
from jax import lax
from jax.experimental import pallas as pl
from jax.experimental.pallas import tpu as pltpu

_LANES = 128
# Per-input-block VMEM budget (bytes): 2 inputs x 2 pipeline buffers x 4 MiB
# = 16 MiB in flight; safe on v5e / v6e / v7x while amortizing the ~0.35 us
# per-grid-step overhead.
_BLOCK_BYTES_BUDGET = 4 * 1024 * 1024


def _cdiv(a, b):
    return -(-a // b)


def _round_up(a, b):
    return _cdiv(a, b) * b


def _sublane_tile(dtype):
    # Native VMEM sublane tile: f32 -> 8, bf16/f16 -> 16, int8/bool -> 32.
    return max(8, 32 // max(1, jnp.dtype(dtype).itemsize))


def _has_two_tensorcores():
    try:
        kind = jax.devices()[0].device_kind.lower()
    except Exception:
        return False
    return ("v7" in kind) or ("v4" in kind) or ("v5p" in kind)


def _vmem_limit_bytes():
    cap = None
    try:
        cap = getattr(pltpu.get_tpu_info(), "vmem_capacity_bytes", None)
    except Exception:
        cap = None
    if not cap:
        return 48 * 1024 * 1024            # safe default on every generation
    # ~48 MiB on v7x (64 MiB physical), 64 MiB on v5e / v6e (128 MiB physical)
    return min(64 * 1024 * 1024, (int(cap) * 3) // 4)


def _dice_partial_kernel(p_ref, t_ref, num_ref, den_ref, *,
                         p_exp, k_per, s, r_valid, need_mask):
    """Accumulate per-row, per-lane partial sums of p*t and p^p + t^p.

    p_ref / t_ref : (TN, S, 128) tile of the reshaped [N, R, 128] inputs,
                    native dtype (cast to f32 here, on the VPU).
    num_ref/den_ref: (1, TN, 128) f32 lane-shaped accumulators, resident
                     across the reduction (last) grid axis.
    """
    k = pl.program_id(2)

    @pl.when(k == 0)
    def _():
        num_ref[...] = jnp.zeros_like(num_ref)
        den_ref[...] = jnp.zeros_like(den_ref)

    p = p_ref[...].astype(jnp.float32)
    t = t_ref[...].astype(jnp.float32)

    num_part = p * t
    if p_exp == 2:
        den_part = p * p + t * t
    elif isinstance(p_exp, int):
        # integer_pow stays on the VPU (no EUP log/exp transcendentals).
        den_part = lax.integer_pow(p, p_exp) + lax.integer_pow(t, p_exp)
    else:
        den_part = p ** p_exp + t ** p_exp

    if need_mask:
        # Global 128-lane-row index of each sublane in this tile.  Rows at or
        # beyond r_valid are either the ragged tail of the last block or the
        # duplicated (clamped) block of the 2-core split: select-to-zero so
        # undefined out-of-bounds data never reaches the accumulators.
        row0 = (pl.program_id(1) * k_per + k) * s
        rows = row0 + lax.broadcasted_iota(jnp.int32, (1, s, _LANES), 1)
        valid = rows < r_valid
        num_part = jnp.where(valid, num_part, 0.0)
        den_part = jnp.where(valid, den_part, 0.0)

    # Reduce only over the sublane (S) axis; lanes stay un-reduced so the hot
    # loop has no cross-lane XLU reduce and no narrow masked store.
    num_ref[...] += jnp.sum(num_part, axis=1)[None]
    den_ref[...] += jnp.sum(den_part, axis=1)[None]


def binary_dice_loss(predict, target, smooth=1.0, p=2, reduction="mean"):
    """Pallas implementation of BinaryDiceLoss.forward."""
    predict = jnp.asarray(predict)
    target = jnp.asarray(target)
    assert predict.shape[0] == target.shape[0], \
        "predict & target batch size don't match"
    n = predict.shape[0]

    # Float-but-integer exponents go down the integer_pow (VPU) path.
    if isinstance(p, float) and float(p).is_integer():
        p = int(p)

    # Native-dtype streaming: no wrapper-side upcast.
    pred2d = predict.reshape(n, -1)
    targ2d = target.reshape(n, -1)
    d = pred2d.shape[1]

    sub = max(_sublane_tile(pred2d.dtype), _sublane_tile(targ2d.dtype))
    item = max(jnp.dtype(pred2d.dtype).itemsize,
               jnp.dtype(targ2d.dtype).itemsize)

    # Pad D only to the next multiple of 128 (free reshape to [N, R, 128]);
    # for tiny inputs pad up to one full sublane tile so the block never
    # exceeds the array.  Zero padding is exact only for p > 0 (0^p == 0).
    d_pad = _round_up(max(d, 1), _LANES)
    r = d_pad // _LANES
    if r < sub:
        r = sub
        d_pad = r * _LANES
    if d_pad != d:
        if not (isinstance(p, (int, float)) and p > 0):
            raise NotImplementedError(
                "feature dim not a multiple of 128 requires p > 0")
        pred2d = jnp.pad(pred2d, ((0, 0), (0, d_pad - d)))
        targ2d = jnp.pad(targ2d, ((0, 0), (0, d_pad - d)))
    pred3d = pred2d.reshape(n, r, _LANES)
    targ3d = targ2d.reshape(n, r, _LANES)

    # --- tile sizing (~4 MiB per input block) -------------------------------
    row_bytes_min = sub * _LANES * item
    if n * row_bytes_min <= _BLOCK_BYTES_BUDGET:
        tn = n
        s = (_BLOCK_BYTES_BUDGET // (n * _LANES * item)) // sub * sub
        s = max(sub, min(s, (r // sub) * sub))
    else:
        # Large-N path: tile N too (adds a parallel axis, avoids VMEM OOM).
        s = sub
        tn = min(n, _BLOCK_BYTES_BUDGET // row_bytes_min)
        tn = max(8, (tn // 8) * 8)       # keep output block sublane-aligned
    n_blk = _cdiv(n, tn)
    total_k = _cdiv(r, s)

    # 2-way chunk split only on 2-TensorCore chips; never pads the reduction.
    n_par = 2 if (_has_two_tensorcores() and total_k >= 2) else 1
    k_per = _cdiv(total_k, n_par)
    clamp = (n_par * k_per) != total_k
    need_mask = (r % s != 0) or clamp

    def in_map(bn, i, k):
        kb = i * k_per + k
        if clamp:
            kb = jnp.minimum(kb, total_k - 1)
        return (bn, kb, 0)

    def out_map(bn, i, k):
        return (i, bn, 0)

    kernel = functools.partial(
        _dice_partial_kernel, p_exp=p, k_per=k_per, s=s, r_valid=r,
        need_mask=need_mask)

    num_part, den_part = pl.pallas_call(
        kernel,
        out_shape=(
            jax.ShapeDtypeStruct((n_par, n, _LANES), jnp.float32),
            jax.ShapeDtypeStruct((n_par, n, _LANES), jnp.float32),
        ),
        grid_spec=pltpu.PrefetchScalarGridSpec(
            num_scalar_prefetch=0,
            grid=(n_blk, n_par, k_per),
            in_specs=[
                pl.BlockSpec((tn, s, _LANES), in_map),
                pl.BlockSpec((tn, s, _LANES), in_map),
            ],
            out_specs=[
                pl.BlockSpec((1, tn, _LANES), out_map),
                pl.BlockSpec((1, tn, _LANES), out_map),
            ],
        ),
        compiler_params=pltpu.CompilerParams(
            dimension_semantics=("parallel", "parallel", "arbitrary"),
            vmem_limit_bytes=_vmem_limit_bytes()),
    )(pred3d, targ3d)

    # Tiny epilogue on [n_par, N, 128] partials: cross-lane/chunk reduce,
    # smooth, divide, and the batch reduction.
    num = jnp.sum(num_part, axis=(0, 2)) + smooth
    den = jnp.sum(den_part, axis=(0, 2)) + smooth
    loss = 1.0 - num / den

    if reduction == "mean":
        return jnp.mean(loss)
    elif reduction == "sum":
        return jnp.sum(loss)
    elif reduction == "none":
        return loss
    else:
        raise Exception("Unexpected reduction {}".format(reduction))


def _reference(predict, target, smooth=1.0, p=2, reduction="mean"):
    n = predict.shape[0]
    p2 = predict.reshape(n, -1).astype(jnp.float32)
    t2 = target.reshape(n, -1).astype(jnp.float32)
    num = jnp.sum(p2 * t2, axis=1) + smooth
    den = jnp.sum(p2 ** p + t2 ** p, axis=1) + smooth
    loss = 1.0 - num / den
    if reduction == "mean":
        return jnp.mean(loss)
    if reduction == "sum":
        return jnp.sum(loss)
    return loss


if __name__ == "__main__":
    key = jax.random.PRNGKey(0)
    k1, k2 = jax.random.split(key)

    # [N, C, H, W] = [2, 4, 16, 16], f32 inputs, p=2, mean reduction.
    predict = jax.nn.sigmoid(
        jax.random.normal(k1, (2, 4, 16, 16), dtype=jnp.float32))
    target = (jax.random.uniform(k2, (2, 4, 16, 16)) > 0.5).astype(jnp.float32)
    out = binary_dice_loss(predict, target, smooth=1.0, p=2, reduction="mean")
    out = jax.block_until_ready(out)
    ref = _reference(predict, target, smooth=1.0, p=2, reduction="mean")
    assert jnp.allclose(out, ref, rtol=1e-5, atol=1e-5), (out, ref)

    # Non-128-multiple D exercises the zero-padding path; p=3 exercises the
    # integer_pow denominator; reduction='none' returns the per-row vector.
    k3, k4 = jax.random.split(k2)
    pred_odd = jax.nn.sigmoid(
        jax.random.normal(k3, (2, 3, 7, 5), dtype=jnp.float32))
    targ_odd = (jax.random.uniform(k4, (2, 3, 7, 5)) > 0.5).astype(jnp.float32)
    out2 = binary_dice_loss(pred_odd, targ_odd, smooth=1.0, p=3,
                            reduction="none")
    out2 = jax.block_until_ready(out2)
    ref2 = _reference(pred_odd, targ_odd, smooth=1.0, p=3, reduction="none")
    assert jnp.allclose(out2, ref2, rtol=1e-5, atol=1e-5), (out2, ref2)

    # Native bf16 predict (mixed dtype with f32 target) exercises the
    # native-dtype streaming path and the ragged-tail masking (R=18, S=16).
    k5, k6 = jax.random.split(k4)
    pred_bf16 = jax.nn.sigmoid(
        jax.random.normal(k5, (2, 4, 24, 24), dtype=jnp.float32)
    ).astype(jnp.bfloat16)
    targ_f32 = (jax.random.uniform(k6, (2, 4, 24, 24)) > 0.5).astype(jnp.float32)
    out3 = binary_dice_loss(pred_bf16, targ_f32, smooth=1.0, p=2,
                            reduction="sum")
    out3 = jax.block_until_ready(out3)
    ref3 = _reference(pred_bf16, targ_f32, smooth=1.0, p=2, reduction="sum")
    assert jnp.allclose(out3, ref3, rtol=1e-4, atol=1e-4), (out3, ref3)

    print("KERNEL_OK")
</pallas_src>

<mosaic_0001>
module attributes {stable_mosaic.version = 11 : i64} {
  func.func @_dice_partial_kernel(%arg0: i32, %arg1: i32, %arg2: i32, %arg3: memref<2x8x128xf32, #tpu.memory_space<vmem>>, %arg4: memref<2x8x128xf32, #tpu.memory_space<vmem>>, %arg5: memref<1x2x128xf32, #tpu.memory_space<vmem>>, %arg6: memref<1x2x128xf32, #tpu.memory_space<vmem>>) attributes {dimension_semantics = [#tpu.dimension_semantics<parallel>, #tpu.dimension_semantics<parallel>, #tpu.dimension_semantics<arbitrary>], iteration_bounds = array<i64: 1, 1, 1>, scalar_prefetch = 0 : i64, scratch_operands = 0 : i64, tpu.core_type = #tpu.core_type<tc>, window_params = [{transform_indices = @transform_0, window_bounds = array<i64: 2, 8, 128>}, {transform_indices = @transform_1, window_bounds = array<i64: 2, 8, 128>}, {transform_indices = @transform_2, window_bounds = array<i64: 1, 2, 128>}, {transform_indices = @transform_3, window_bounds = array<i64: 1, 2, 128>}]} {
    %c0_i32 = arith.constant 0 : i32
    %0 = arith.cmpi eq, %arg2, %c0_i32 : i32
    %1 = arith.extui %0 : i1 to i32
    %c0_i32_0 = arith.constant 0 : i32
    %2 = arith.cmpi ne, %1, %c0_i32_0 : i32
    scf.if %2 {
      %cst_19 = arith.constant 0.000000e+00 : f32
      %19 = vector.broadcast %cst_19 : f32 to vector<1x2x128xf32>
      %c0_20 = arith.constant 0 : index
      %c0_21 = arith.constant 0 : index
      %c0_22 = arith.constant 0 : index
      %20 = vector.load %arg5[%c0_20, %c0_21, %c0_22] : memref<1x2x128xf32, #tpu.memory_space<vmem>>, vector<1x2x128xf32>
      tpu.vector_store %arg5[%c0_20, %c0_21, %c0_22], %19 {strides = array<i32>} : memref<1x2x128xf32, #tpu.memory_space<vmem>>, vector<1x2x128xf32>,
      %cst_23 = arith.constant 0.000000e+00 : f32
      %21 = vector.broadcast %cst_23 : f32 to vector<1x2x128xf32>
      %c0_24 = arith.constant 0 : index
      %c0_25 = arith.constant 0 : index
      %c0_26 = arith.constant 0 : index
      %22 = vector.load %arg6[%c0_24, %c0_25, %c0_26] : memref<1x2x128xf32, #tpu.memory_space<vmem>>, vector<1x2x128xf32>
      tpu.vector_store %arg6[%c0_24, %c0_25, %c0_26], %21 {strides = array<i32>} : memref<1x2x128xf32, #tpu.memory_space<vmem>>, vector<1x2x128xf32>,
    } else {
    }
    %c0 = arith.constant 0 : index
    %c0_1 = arith.constant 0 : index
    %c0_2 = arith.constant 0 : index
    %3 = vector.load %arg3[%c0, %c0_1, %c0_2] : memref<2x8x128xf32, #tpu.memory_space<vmem>>, vector<2x8x128xf32>
    %c0_3 = arith.constant 0 : index
    %c0_4 = arith.constant 0 : index
    %c0_5 = arith.constant 0 : index
    %4 = vector.load %arg4[%c0_3, %c0_4, %c0_5] : memref<2x8x128xf32, #tpu.memory_space<vmem>>, vector<2x8x128xf32>
    %5 = arith.mulf %3, %4 : vector<2x8x128xf32>
    %6 = arith.mulf %3, %3 : vector<2x8x128xf32>
    %7 = arith.mulf %4, %4 : vector<2x8x128xf32>
    %8 = arith.addf %6, %7 : vector<2x8x128xf32>
    %c0_6 = arith.constant 0 : index
    %c0_7 = arith.constant 0 : index
    %c0_8 = arith.constant 0 : index
    %9 = vector.load %arg5[%c0_6, %c0_7, %c0_8] : memref<1x2x128xf32, #tpu.memory_space<vmem>>, vector<1x2x128xf32>
    %cst = arith.constant dense<0.000000e+00> : vector<2x128xf32>
    %10 = vector.multi_reduction <add>, %5, %cst [1] : vector<2x8x128xf32> to vector<2x128xf32>
    %11 = vector.shape_cast %10 : vector<2x128xf32> to vector<1x2x128xf32>
    %12 = arith.addf %9, %11 : vector<1x2x128xf32>
    %c0_9 = arith.constant 0 : index
    %c0_10 = arith.constant 0 : index
    %c0_11 = arith.constant 0 : index
    %13 = vector.load %arg5[%c0_9, %c0_10, %c0_11] : memref<1x2x128xf32, #tpu.memory_space<vmem>>, vector<1x2x128xf32>
    tpu.vector_store %arg5[%c0_9, %c0_10, %c0_11], %12 {strides = array<i32>} : memref<1x2x128xf32, #tpu.memory_space<vmem>>, vector<1x2x128xf32>,
    %c0_12 = arith.constant 0 : index
    %c0_13 = arith.constant 0 : index
    %c0_14 = arith.constant 0 : index
    %14 = vector.load %arg6[%c0_12, %c0_13, %c0_14] : memref<1x2x128xf32, #tpu.memory_space<vmem>>, vector<1x2x128xf32>
    %cst_15 = arith.constant dense<0.000000e+00> : vector<2x128xf32>
    %15 = vector.multi_reduction <add>, %8, %cst_15 [1] : vector<2x8x128xf32> to vector<2x128xf32>
    %16 = vector.shape_cast %15 : vector<2x128xf32> to vector<1x2x128xf32>
    %17 = arith.addf %14, %16 : vector<1x2x128xf32>
    %c0_16 = arith.constant 0 : index
    %c0_17 = arith.constant 0 : index
    %c0_18 = arith.constant 0 : index
    %18 = vector.load %arg6[%c0_16, %c0_17, %c0_18] : memref<1x2x128xf32, #tpu.memory_space<vmem>>, vector<1x2x128xf32>
    tpu.vector_store %arg6[%c0_16, %c0_17, %c0_18], %17 {strides = array<i32>} : memref<1x2x128xf32, #tpu.memory_space<vmem>>, vector<1x2x128xf32>,
    return
  }
  func.func @transform_0(%arg0: i32, %arg1: i32, %arg2: i32) -> (i32, i32, i32) {
    %c1_i32 = arith.constant 1 : i32
    %0 = arith.muli %arg1, %c1_i32 : i32
    %1 = arith.addi %0, %arg2 : i32
    %c0_i32 = arith.constant 0 : i32
    %c0_i32_0 = arith.constant 0 : i32
    return %arg0, %1, %c0_i32 : i32, i32, i32
  }
  func.func @transform_1(%arg0: i32, %arg1: i32, %arg2: i32) -> (i32, i32, i32) {
    %c1_i32 = arith.constant 1 : i32
    %0 = arith.muli %arg1, %c1_i32 : i32
    %1 = arith.addi %0, %arg2 : i32
    %c0_i32 = arith.constant 0 : i32
    %c0_i32_0 = arith.constant 0 : i32
    return %arg0, %1, %c0_i32 : i32, i32, i32
  }
  func.func @transform_2(%arg0: i32, %arg1: i32, %arg2: i32) -> (i32, i32, i32) {
    %c0_i32 = arith.constant 0 : i32
    %c0_i32_0 = arith.constant 0 : i32
    return %arg1, %arg0, %c0_i32 : i32, i32, i32
  }
  func.func @transform_3(%arg0: i32, %arg1: i32, %arg2: i32) -> (i32, i32, i32) {
    %c0_i32 = arith.constant 0 : i32
    %c0_i32_0 = arith.constant 0 : i32
    return %arg1, %arg0, %c0_i32 : i32, i32, i32
  }
}

</mosaic_0001>

<llo_original>
// kernel: tpu_custom_call.1
$region0: #{tpu_custom_call.1}
  #allocation0 [shape = 'u32[]', space=smem, size = 0x4, offset = 0x4, fixed_abs, tag = 'smem constant byte address 0x4 - core index']
  #allocation1 [shape = 'u32[144,128]{1,0:T(1,128)}', space=vmem, size = 0x12000, scoped, tag = 'internal scratch']
  %s0 = inlined_call_operand.hbm [shape: f32[2,8,128], index: 0, kind: input, shape index: {}]
  %s1 = inlined_call_operand.hbm [shape: f32[2,8,128], index: 1, kind: input, shape index: {}]
  %s2 = inlined_call_operand.hbm [shape: f32[1,2,128], index: 2, kind: output, shape index: {0}]
  %s3 = inlined_call_operand.hbm [shape: f32[1,2,128], index: 3, kind: output, shape index: {1}]
  %4 = xla_tuple %s2, %s3
  %s5 = sld [smem:[#allocation0]]
  $region38: #{tpu_custom_call.1} parent=0
    _
  %s7 = ssub.s32 1, %s5
  %s8 = scalar_select 0, %s7, %s5
  $region1: #{tpu_custom_call.1} parent=0
    #allocation2 [shape = 'u8[8192]{0}', space=vmem, size = 0x2000, scoped, tag = 'input window, operand 0, single buffered']
    #allocation3 [shape = 's32[1]{0}', space=sflag, size = 0x4, scoped, tag = 'scoped memory for tpu_custom_call.1']
    #allocation4 [shape = 's32[1]{0}', space=sflag, size = 0x4, scoped, tag = 'scoped memory for tpu_custom_call.1']
    #allocation5 [shape = 'u8[8192]{0}', space=vmem, size = 0x2000, scoped, tag = 'input window, operand 1, single buffered']
    #allocation6 [shape = 's32[1]{0}', space=sflag, size = 0x4, scoped, tag = 'scoped memory for tpu_custom_call.1']
    #allocation7 [shape = 'u8[1024]{0}', space=vmem, size = 0x400, scoped, tag = 'output window, operand 0, single buffered']
    #allocation8 [shape = 'u8[1024]{0}', space=vmem, size = 0x400, scoped, tag = 'output window, operand 1, single buffered']
    #allocation9 [shape = 's32[1]{0}', space=sflag, size = 0x4, scoped, tag = 'scoped memory for tpu_custom_call.1']
    %9 = vsyncpa [#allocation3], 0
    %10 = vsyncpa [#allocation6], 0
    %11 = vsyncpa [#allocation4], 0
    %12 = vsyncpa [#allocation9], 0
    // Predicated region
    $region2: #{tpu_custom_call.1} parent=1 // pred_check
      _
    $region3: #{tpu_custom_call.1} parent=1 // pred_check_branch
      %14 = sbr.rel (0) target = $region5
    $region4: #{tpu_custom_call.1} parent=1 // pred_region
      %s15 = sadd.s32 0, 0
      %s17 = ssub.s32 256, 256
      %18 = vsyncadd [#allocation3], %s17
      %s19 = smul.addr %s15, 128
      %s20 = scalar_lea.hbm %s0, %s19
      %s21 = sshll.u32 [#allocation2], 4
      %s22 = int_to_ptr.vmem [resolvable:$true] %s21
      %27 = dma.hbm_to_vmem [thread:$0]  %s20, 256, %s22, [#allocation3], 128, 128, 8
    $region5: #{tpu_custom_call.1} parent=1 // pred_fallthru
      _
    // Predicated region
    $region6: #{tpu_custom_call.1} parent=1 // pred_check
      _
    $region7: #{tpu_custom_call.1} parent=1 // pred_check_branch
      %29 = sbr.rel (0) target = $region9
    $region8: #{tpu_custom_call.1} parent=1 // pred_region
      %s30 = sadd.s32 0, 0
      %s32 = ssub.s32 256, 256
      %33 = vsyncadd [#allocation6], %s32
      %s34 = smul.addr %s30, 128
      %s35 = scalar_lea.hbm %s1, %s34
      %s36 = sshll.u32 [#allocation5], 4
      %s37 = int_to_ptr.vmem [resolvable:$true] %s36
      %42 = dma.hbm_to_vmem [thread:$0]  %s35, 256, %s37, [#allocation6], 128, 128, 8
    $region9: #{tpu_custom_call.1} parent=1 // pred_fallthru
      _
    // Predicated region
    $region10: #{tpu_custom_call.1} parent=1 // pred_check
      _
    $region11: #{tpu_custom_call.1} parent=1 // pred_check_branch
      %44 = sbr.rel (0) target = $region13
    $region12: #{tpu_custom_call.1} parent=1 // pred_region
      %45 = dma.done [#allocation3], 256
    $region13: #{tpu_custom_call.1} parent=1 // pred_fallthru
      _
    // Predicated region
    $region14: #{tpu_custom_call.1} parent=1 // pred_check
      _
    $region15: #{tpu_custom_call.1} parent=1 // pred_check_branch
      %47 = sbr.rel (0) target = $region17
    $region16: #{tpu_custom_call.1} parent=1 // pred_region
      %48 = dma.done [#allocation6], 256
    $region17: #{tpu_custom_call.1} parent=1 // pred_fallthru
      _
    %s49 = sadd.s32 0, 0
    %s50 = sadd.s32 0, 0
    %p51 = scmp.eq.s32.totalorder 0, 0
    // Predicated region
    $region18: #{tpu_custom_call.1} parent=1 // pred_check
      %p52 = pneg %p51
    $region19: #{tpu_custom_call.1} parent=1 // pred_check_branch
      %54 = sbr.rel (%p52) target = $region21
    $region20: #{tpu_custom_call.1} parent=1 // pred_region
      %55 = vst [vmem:[#allocation7] sm:$0x3] 0.0
      %56 = vst [vmem:[#allocation8] sm:$0x3] 0.0
    $region21: #{tpu_custom_call.1} parent=1 // pred_fallthru
      _
    %v57 = vld [vmem:[#allocation2] sm:$0xff]
    %v58 = vld [vmem:[#allocation2 + $0x8] sm:$0xff]
    %v59 = vld [vmem:[#allocation5] sm:$0xff]
    %v60 = vld [vmem:[#allocation5 + $0x8] sm:$0xff]
    %v61 = vmul.f32 %v57, %v59
    %v62 = vmul.f32 %v58, %v60
    %v63 = vmul.f32 %v57, %v57
    %v64 = vmul.f32 %v58, %v58
    %v65 = vmul.f32 %v59, %v59
    %v66 = vmul.f32 %v60, %v60
    %v67 = vadd.f32 %v63, %v65
    %v68 = vadd.f32 %v64, %v66
    %v69 = vld [vmem:[#allocation7] sm:$0x3]
    %v70 = vrot.slane %v61, 4
    %v71 = vadd.f32 %v61, %v70
    %v72 = vrot.slane %v71, 2
    %v73 = vadd.f32 %v71, %v72
    %v74 = vrot.slane %v73, 1
    %v75 = vadd.f32 %v73, %v74
    %v76 = vrot.slane %v62, 4
    %v77 = vadd.f32 %v62, %v76
    %v78 = vrot.slane %v77, 2
    %v79 = vadd.f32 %v77, %v78
    %v80 = vrot.slane %v79, 1
    %v81 = vadd.f32 %v79, %v80
    %vm84 = vcmask 1041409
    %v85 = vsel %vm84, %v81, %v75
    %v87 = vadd.f32 %v69, %v85
    %88 = vst [vmem:[#allocation7] sm:$0x3] %v87
    %v89 = vld [vmem:[#allocation8] sm:$0x3]
    %v90 = vrot.slane %v67, 4
    %v91 = vadd.f32 %v67, %v90
    %v92 = vrot.slane %v91, 2
    %v93 = vadd.f32 %v91, %v92
    %v94 = vrot.slane %v93, 1
    %v95 = vadd.f32 %v93, %v94
    %v96 = vrot.slane %v68, 4
    %v97 = vadd.f32 %v68, %v96
    %v98 = vrot.slane %v97, 2
    %v99 = vadd.f32 %v97, %v98
    %v100 = vrot.slane %v99, 1
    %v101 = vadd.f32 %v99, %v100
    %v104 = vsel %vm84, %v101, %v95
    %v106 = vadd.f32 %v89, %v104
    %107 = vst [vmem:[#allocation8] sm:$0x3] %v106
    // Predicated region
    $region22: #{tpu_custom_call.1} parent=1 // pred_check
      _
    $region23: #{tpu_custom_call.1} parent=1 // pred_check_branch
      %109 = sbr.rel (0) target = $region25
    $region24: #{tpu_custom_call.1} parent=1 // pred_region
      %s111 = ssub.s32 32, 32
      %112 = vsyncadd [#allocation4], %s111
      %s114 = sshll.u32 [#allocation7], 4
      %s115 = int_to_ptr.vmem [resolvable:$true] %s114
      %117 = dma.vmem_to_hbm [thread:$0]  %s115, 32, %s2, [#allocation4]
    $region25: #{tpu_custom_call.1} parent=1 // pred_fallthru
      _
    // Predicated region
    $region26: #{tpu_custom_call.1} parent=1 // pred_check
      _
    $region27: #{tpu_custom_call.1} parent=1 // pred_check_branch
      %119 = sbr.rel (0) target = $region29
    $region28: #{tpu_custom_call.1} parent=1 // pred_region
      %s121 = ssub.s32 32, 32
      %122 = vsyncadd [#allocation9], %s121
      %s124 = sshll.u32 [#allocation8], 4
      %s125 = int_to_ptr.vmem [resolvable:$true] %s124
      %127 = dma.vmem_to_hbm [thread:$0]  %s125, 32, %s3, [#allocation9]
    $region29: #{tpu_custom_call.1} parent=1 // pred_fallthru
      _
    // Predicated region
    $region30: #{tpu_custom_call.1} parent=1 // pred_check
      _
    $region31: #{tpu_custom_call.1} parent=1 // pred_check_branch
      %129 = sbr.rel (0) target = $region33
    $region32: #{tpu_custom_call.1} parent=1 // pred_region
      %130 = dma.done [#allocation4], 32
    $region33: #{tpu_custom_call.1} parent=1 // pred_fallthru
      _
    // Predicated region
    $region34: #{tpu_custom_call.1} parent=1 // pred_check
      _
    $region35: #{tpu_custom_call.1} parent=1 // pred_check_branch
      %132 = sbr.rel (0) target = $region37
    $region36: #{tpu_custom_call.1} parent=1 // pred_region
      %133 = dma.done [#allocation9], 32
    $region37: #{tpu_custom_call.1} parent=1 // pred_fallthru
      _
    %134 = vsyncpa [#allocation3], 1
    %135 = vsyncpa [#allocation6], 1
    %136 = vsyncpa [#allocation4], 1
    %137 = vsyncpa [#allocation9], 1

</llo_original>
